<compile_context>
chip_gen: v7x
topology: tpu7x:2x2x1
jax: 0.10.0
libtpu: 0.0.40
codegen_flags: <defaults>
</compile_context>

<pallas_src>
from functools import partial

import jax
import jax.numpy as jnp
from jax.experimental import pallas as pl
from jax.experimental.pallas import tpu as pltpu


# --------------------------------------------------------------------------------------
# Single RHS evaluation (== the PyTorch module's forward pass)
# --------------------------------------------------------------------------------------
def _coupled_ode_rhs_kernel(edge_ref, z_ref, w_ref, b_ref, o_ref):
    # edge_ref: (B, N, N) f32   z_ref: (B, N, D) f32
    # w_ref:    (D, D)    f32   b_ref: (1, D)   f32   o_ref: (B, N, D) f32
    B, N, D = z_ref.shape

    # 1) Node-wise linear map as ONE flattened matmul: (B*N, D) @ (D, D) on the MXU.
    zw = jnp.dot(
        z_ref[...].reshape(B * N, D), w_ref[...],
        preferred_element_type=jnp.float32,
    ).reshape(B, N, D)

    # 2) Graph message passing: batched (N, N) @ (N, D), f32 accumulation.
    msg = jnp.einsum(
        "bij,bjd->bid", edge_ref[...], zw, preferred_element_type=jnp.float32
    )

    # 3) Bias + tanh in f32 (VPU/EUP).  Store stays f32 (v5e EUP/VPU have no bf16).
    o_ref[...] = jnp.tanh(msg + b_ref[...]).astype(o_ref.dtype)


@jax.jit
def coupled_ode_rhs(edge, z, w, b):
    """dz/dt = tanh(edge @ z @ W + b) in one gridless Pallas call (no pipeline overhead).

    edge: [B, N, N], z: [B, N, D], w: [D, D], b: [1, D], all float32.
    """
    B, N, D = z.shape
    assert edge.shape == (B, N, N)
    assert w.shape == (D, D)
    assert b.shape == (1, D)

    flops = 2 * B * (N * D * D + N * N * D)
    bytes_accessed = 4 * (edge.size + z.size + w.size + b.size + B * N * D)

    vmem_spec = pl.BlockSpec(memory_space=pltpu.MemorySpace.VMEM)
    return pl.pallas_call(
        _coupled_ode_rhs_kernel,
        out_shape=jax.ShapeDtypeStruct((B, N, D), z.dtype),
        in_specs=[vmem_spec, vmem_spec, vmem_spec, vmem_spec],
        out_specs=vmem_spec,
        cost_estimate=pl.CostEstimate(
            flops=flops, transcendentals=B * N * D, bytes_accessed=bytes_accessed
        ),
    )(edge, z, w, b)


# --------------------------------------------------------------------------------------
# Fused fixed-step RK4 solve: n_steps * 4 RHS evaluations in ONE pallas_call.
# edge / z0 / W / b have constant-index BlockSpecs -> stay VMEM-resident across the grid;
# the evolving state lives in a VMEM scratch, the final state is stored on the last step.
# --------------------------------------------------------------------------------------
def _rk4_solve_kernel(edge_ref, z0_ref, w_ref, b_ref, o_ref, z_scr, *, dt):
    B, N, D = z0_ref.shape
    step = pl.program_id(0)

    @pl.when(step == 0)
    def _():
        z_scr[...] = z0_ref[...].astype(jnp.float32)

    edge = edge_ref[...]
    w = w_ref[...]
    bias = b_ref[...]

    def rhs(z):
        zw = jnp.dot(
            z.reshape(B * N, D), w, preferred_element_type=jnp.float32
        ).reshape(B, N, D)
        msg = jnp.einsum("bij,bjd->bid", edge, zw, preferred_element_type=jnp.float32)
        return jnp.tanh(msg + bias)

    z = z_scr[...]
    k1 = rhs(z)
    k2 = rhs(z + (0.5 * dt) * k1)
    k3 = rhs(z + (0.5 * dt) * k2)
    k4 = rhs(z + dt * k3)
    z_new = z + (dt / 6.0) * (k1 + 2.0 * k2 + 2.0 * k3 + k4)
    z_scr[...] = z_new

    @pl.when(step == pl.num_programs(0) - 1)
    def _():
        o_ref[...] = z_new.astype(o_ref.dtype)


@partial(jax.jit, static_argnames=("n_steps", "dt"))
def coupled_ode_rk4_solve(edge, z0, w, b, *, n_steps, dt):
    """Integrate dz/dt = tanh(edge @ z @ W + b) with fixed-step RK4 in one Pallas call."""
    B, N, D = z0.shape
    assert edge.shape == (B, N, N)
    assert w.shape == (D, D)
    assert b.shape == (1, D)

    rhs_flops = 2 * B * (N * D * D + N * N * D)
    flops = n_steps * (4 * rhs_flops + 10 * B * N * D)
    transcendentals = n_steps * 4 * B * N * D
    bytes_accessed = 4 * (edge.size + z0.size + w.size + b.size + B * N * D)

    return pl.pallas_call(
        partial(_rk4_solve_kernel, dt=float(dt)),
        out_shape=jax.ShapeDtypeStruct((B, N, D), z0.dtype),
        grid_spec=pltpu.PrefetchScalarGridSpec(
            num_scalar_prefetch=0,
            grid=(n_steps,),
            in_specs=[
                pl.BlockSpec((B, N, N), lambda s: (0, 0, 0)),  # edge   (resident)
                pl.BlockSpec((B, N, D), lambda s: (0, 0, 0)),  # z0     (resident)
                pl.BlockSpec((D, D), lambda s: (0, 0)),        # W      (resident)
                pl.BlockSpec((1, D), lambda s: (0, 0)),        # bias   (resident)
            ],
            out_specs=pl.BlockSpec((B, N, D), lambda s: (0, 0, 0)),
            scratch_shapes=[pltpu.VMEM((B, N, D), jnp.float32)],
        ),
        compiler_params=pltpu.CompilerParams(
            dimension_semantics=("arbitrary",),  # sequential time-stepping
        ),
        cost_estimate=pl.CostEstimate(
            flops=flops,
            transcendentals=transcendentals,
            bytes_accessed=bytes_accessed,
        ),
    )(edge, z0, w, b)


# --------------------------------------------------------------------------------------
# Module wrapper (mirrors the PyTorch CoupledODEFunc: nfe counter, external self.edge)
# --------------------------------------------------------------------------------------
class CoupledODEFuncPallas:
    def __init__(self, w, b, num_atom, dropout=0.0):
        self.num_atom = num_atom
        self.nfe = 0      # NOTE: Python counter; won't tick if an outer solver is jitted.
        self.edge = None  # set externally, as in the PyTorch module
        # Parameters are constants across every nfe evaluation: materialize as f32 ONCE
        # here (no per-call pad / cast / convert HLOs).
        self.w = jnp.asarray(w, dtype=jnp.float32)
        self.b = jnp.asarray(b, dtype=jnp.float32)
        # nn.Dropout is declared in __init__ but never applied in forward(); omitted.

    def __call__(self, t_local, z, backwards=False):
        # t_local is unused by the reference forward pass.
        self.nfe += 1
        return coupled_ode_rhs(self.edge, z, self.w, self.b)


if __name__ == "__main__":
    # Small shapes consistent with the module docstring: z: B x N x (d + N)
    B = 2           # num_batch
    N = 8           # num_node (num_atom)
    d = 24          # latent dim
    D = d + N       # 32

    key = jax.random.PRNGKey(0)
    k_z, k_e, k_w, k_b = jax.random.split(key, 4)

    z = jax.random.normal(k_z, (B, N, D), dtype=jnp.float32)
    edge = jax.nn.softmax(jax.random.normal(k_e, (B, N, N), dtype=jnp.float32), axis=-1)
    w = jax.random.normal(k_w, (D, D), dtype=jnp.float32) * (1.0 / jnp.sqrt(D))
    bias = jax.random.normal(k_b, (1, D), dtype=jnp.float32) * 0.01

    ode_func = CoupledODEFuncPallas(w, bias, num_atom=N)
    ode_func.edge = edge  # set externally, as the PyTorch code expects

    # --- single RHS evaluation (module forward) ---
    out = jax.block_until_ready(ode_func(0.0, z))
    ref = jnp.tanh(jnp.einsum("bij,bjd->bid", edge, z) @ w + bias)
    assert out.shape == (B, N, D)
    assert jnp.allclose(out, ref, atol=1e-4, rtol=1e-4), \
        float(jnp.max(jnp.abs(out - ref)))

    # --- fused fixed-step RK4 solve: 16 steps == 64 RHS evals in ONE pallas_call ---
    n_steps, dt = 16, 0.05
    zT = jax.block_until_ready(
        coupled_ode_rk4_solve(edge, z, ode_func.w, ode_func.b, n_steps=n_steps, dt=dt)
    )

    def rhs_ref(zz):
        return jnp.tanh(jnp.einsum("bij,bjd->bid", edge, zz) @ w + bias)

    z_ref = z
    for _ in range(n_steps):
        k1 = rhs_ref(z_ref)
        k2 = rhs_ref(z_ref + 0.5 * dt * k1)
        k3 = rhs_ref(z_ref + 0.5 * dt * k2)
        k4 = rhs_ref(z_ref + dt * k3)
        z_ref = z_ref + (dt / 6.0) * (k1 + 2.0 * k2 + 2.0 * k3 + k4)

    assert zT.shape == (B, N, D)
    assert jnp.allclose(zT, z_ref, atol=1e-4, rtol=1e-4), \
        float(jnp.max(jnp.abs(zT - z_ref)))

    print("KERNEL_OK")
</pallas_src>

<mosaic_0001>
module attributes {stable_mosaic.version = 11 : i64} {
  func.func @_coupled_ode_rhs_kernel(%arg0: memref<2x8x8xf32, #tpu.memory_space<vmem>>, %arg1: memref<2x8x32xf32, #tpu.memory_space<vmem>>, %arg2: memref<32x32xf32, #tpu.memory_space<vmem>>, %arg3: memref<1x32xf32, #tpu.memory_space<vmem>>, %arg4: memref<2x8x32xf32, #tpu.memory_space<vmem>>) attributes {dimension_semantics = [], scalar_prefetch = 0 : i64, scratch_operands = 0 : i64, tpu.core_type = #tpu.core_type<tc>} {
    %c0 = arith.constant 0 : index
    %c0_0 = arith.constant 0 : index
    %c0_1 = arith.constant 0 : index
    %0 = vector.load %arg1[%c0, %c0_0, %c0_1] : memref<2x8x32xf32, #tpu.memory_space<vmem>>, vector<2x8x32xf32>
    %1 = vector.shape_cast %0 : vector<2x8x32xf32> to vector<16x32xf32>
    %c0_2 = arith.constant 0 : index
    %c0_3 = arith.constant 0 : index
    %2 = vector.load %arg2[%c0_2, %c0_3] : memref<32x32xf32, #tpu.memory_space<vmem>>, vector<32x32xf32>
    %cst = arith.constant dense<0.000000e+00> : vector<16x32xf32>
    %3 = tpu.matmul %1, %2, %cst {dimension_numbers = #tpu.dot_dimension_numbers<[1], [0], [0], [1], [0, 0, 1, 1], [], []>} : vector<16x32xf32>, vector<32x32xf32>, vector<16x32xf32> -> vector<16x32xf32>
    %4 = vector.shape_cast %3 : vector<16x32xf32> to vector<2x8x32xf32>
    %c0_4 = arith.constant 0 : index
    %c0_5 = arith.constant 0 : index
    %c0_6 = arith.constant 0 : index
    %5 = vector.load %arg0[%c0_4, %c0_5, %c0_6] : memref<2x8x8xf32, #tpu.memory_space<vmem>>, vector<2x8x8xf32>
    "tpu.trace_start"() <{level = 10 : i32, message = "bij,bjd->bid"}> : () -> ()
    %cst_7 = arith.constant dense<0.000000e+00> : vector<2x8x32xf32>
    %6 = tpu.matmul %5, %4, %cst_7 {dimension_numbers = #tpu.dot_dimension_numbers<[2], [1], [1], [2], [0, 0, 0, 1, 1, 2], [0], [0]>} : vector<2x8x8xf32>, vector<2x8x32xf32>, vector<2x8x32xf32> -> vector<2x8x32xf32>
    "tpu.trace_stop"() : () -> ()
    %c0_8 = arith.constant 0 : index
    %c0_9 = arith.constant 0 : index
    %7 = vector.load %arg3[%c0_8, %c0_9] : memref<1x32xf32, #tpu.memory_space<vmem>>, vector<1x32xf32>
    %8 = vector.shape_cast %7 : vector<1x32xf32> to vector<1x1x32xf32>
    %9 = vector.broadcast %8 : vector<1x1x32xf32> to vector<2x8x32xf32>
    %10 = arith.addf %6, %9 : vector<2x8x32xf32>
    %11 = math.tanh %10 : vector<2x8x32xf32>
    %c0_10 = arith.constant 0 : index
    %c0_11 = arith.constant 0 : index
    %c0_12 = arith.constant 0 : index
    %12 = vector.load %arg4[%c0_10, %c0_11, %c0_12] : memref<2x8x32xf32, #tpu.memory_space<vmem>>, vector<2x8x32xf32>
    tpu.vector_store %arg4[%c0_10, %c0_11, %c0_12], %11 {strides = array<i32>} : memref<2x8x32xf32, #tpu.memory_space<vmem>>, vector<2x8x32xf32>,
    return
  }
}

</mosaic_0001>

<llo_original>
// kernel: coupled_ode_rhs.1
$region0: #{coupled_ode_rhs.1}
  #allocation0 [shape = 'u32[]', space=smem, size = 0x4, offset = 0x4, fixed_abs, tag = 'smem constant byte address 0x4 - core index']
  #allocation1 [shape = 'u32[144,128]{1,0:T(1,128)}', space=vmem, size = 0x12000, scoped, tag = 'internal scratch']
  %s0 = inlined_call_operand.hbm [shape: f32[2,8,8], index: 0, kind: input, shape index: {}]
  %s1 = inlined_call_operand.hbm [shape: f32[2,8,32], index: 1, kind: input, shape index: {}]
  %s2 = inlined_call_operand.hbm [shape: f32[32,32], index: 2, kind: input, shape index: {}]
  %s3 = inlined_call_operand.vmem [shape: f32[1,32], index: 3, kind: input, shape index: {}]
  %s4 = inlined_call_operand.hbm [shape: f32[2,8,32], index: 4, kind: output, shape index: {}]
  %s5 = sld [smem:[#allocation0]]
  $region38: #{coupled_ode_rhs.1} parent=0
    _
  %s7 = ssub.s32 1, %s5
  %s8 = scalar_select 0, %s7, %s5
  $region1: #{coupled_ode_rhs.1} parent=0
    #allocation2 [shape = 'u8[8192]{0}', space=vmem, size = 0x2000, scoped, tag = 'input window, operand 0, single buffered']
    #allocation3 [shape = 's32[1]{0}', space=sflag, size = 0x4, scoped, tag = 'scoped memory for coupled_ode_rhs.1']
    #allocation4 [shape = 's32[1]{0}', space=sflag, size = 0x4, scoped, tag = 'scoped memory for coupled_ode_rhs.1']
    #allocation5 [shape = 'u8[8192]{0}', space=vmem, size = 0x2000, scoped, tag = 'input window, operand 1, single buffered']
    #allocation6 [shape = 's32[1]{0}', space=sflag, size = 0x4, scoped, tag = 'scoped memory for coupled_ode_rhs.1']
    #allocation7 [shape = 'u8[16384]{0}', space=vmem, size = 0x4000, scoped, tag = 'input window, operand 2, single buffered']
    #allocation8 [shape = 'u8[8192]{0}', space=vmem, size = 0x2000, scoped, tag = 'output window, operand 0, single buffered']
    %9 = vsyncpa [#allocation3], 0
    %10 = vsyncpa [#allocation6], 0
    %11 = vsyncpa [#allocation4], 0
    // Predicated region
    $region2: #{coupled_ode_rhs.1} parent=1 // pred_check
      _
    $region3: #{coupled_ode_rhs.1} parent=1 // pred_check_branch
      %13 = sbr.rel (0) target = $region5
    $region4: #{coupled_ode_rhs.1} parent=1 // pred_region
      %s15 = ssub.s32 256, 256
      %16 = vsyncadd [#allocation3], %s15
      %s17 = sshll.u32 [#allocation2], 4
      %s18 = int_to_ptr.vmem [resolvable:$true] %s17
      %23 = dma.hbm_to_vmem [thread:$0]  %s0, 256, %s18, [#allocation3], 128, 128, 8
    $region5: #{coupled_ode_rhs.1} parent=1 // pred_fallthru
      _
    // Predicated region
    $region6: #{coupled_ode_rhs.1} parent=1 // pred_check
      _
    $region7: #{coupled_ode_rhs.1} parent=1 // pred_check_branch
      %25 = sbr.rel (0) target = $region9
    $region8: #{coupled_ode_rhs.1} parent=1 // pred_region
      %s27 = ssub.s32 256, 256
      %28 = vsyncadd [#allocation6], %s27
      %s29 = sshll.u32 [#allocation5], 4
      %s30 = int_to_ptr.vmem [resolvable:$true] %s29
      %35 = dma.hbm_to_vmem [thread:$0]  %s1, 256, %s30, [#allocation6], 128, 128, 8
    $region9: #{coupled_ode_rhs.1} parent=1 // pred_fallthru
      _
    // Predicated region
    $region10: #{coupled_ode_rhs.1} parent=1 // pred_check
      _
    $region11: #{coupled_ode_rhs.1} parent=1 // pred_check_branch
      %37 = sbr.rel (0) target = $region13
    $region12: #{coupled_ode_rhs.1} parent=1 // pred_region
      %s39 = ssub.s32 512, 512
      %40 = vsyncadd [#allocation6], %s39
      %s41 = sshll.u32 [#allocation7], 4
      %s42 = int_to_ptr.vmem [resolvable:$true] %s41
      %47 = dma.hbm_to_vmem [thread:$0]  %s2, 512, %s42, [#allocation6], 128, 128, 8
    $region13: #{coupled_ode_rhs.1} parent=1 // pred_fallthru
      _
    // Predicated region
    $region14: #{coupled_ode_rhs.1} parent=1 // pred_check
      _
    $region15: #{coupled_ode_rhs.1} parent=1 // pred_check_branch
      %49 = sbr.rel (0) target = $region17
    $region16: #{coupled_ode_rhs.1} parent=1 // pred_region
      _
    $region17: #{coupled_ode_rhs.1} parent=1 // pred_fallthru
      _
    // Predicated region
    $region18: #{coupled_ode_rhs.1} parent=1 // pred_check
      _
    $region19: #{coupled_ode_rhs.1} parent=1 // pred_check_branch
      %51 = sbr.rel (0) target = $region21
    $region20: #{coupled_ode_rhs.1} parent=1 // pred_region
      %52 = dma.done [#allocation3], 256
    $region21: #{coupled_ode_rhs.1} parent=1 // pred_fallthru
      _
    // Predicated region
    $region22: #{coupled_ode_rhs.1} parent=1 // pred_check
      _
    $region23: #{coupled_ode_rhs.1} parent=1 // pred_check_branch
      %54 = sbr.rel (0) target = $region25
    $region24: #{coupled_ode_rhs.1} parent=1 // pred_region
      %55 = dma.done [#allocation6], 256
    $region25: #{coupled_ode_rhs.1} parent=1 // pred_fallthru
      _
    // Predicated region
    $region26: #{coupled_ode_rhs.1} parent=1 // pred_check
      _
    $region27: #{coupled_ode_rhs.1} parent=1 // pred_check_branch
      %57 = sbr.rel (0) target = $region29
    $region28: #{coupled_ode_rhs.1} parent=1 // pred_region
      %58 = dma.done [#allocation6], 512
    $region29: #{coupled_ode_rhs.1} parent=1 // pred_fallthru
      _
    %v59 = vld [vmem:[#allocation5] sm:$0xff]
    %v60 = vld [vmem:[#allocation5 + $0x8] sm:$0xff]
    %v61 = vld [vmem:[#allocation7] sm:$0xff]
    %v62 = vld [vmem:[#allocation7 + $0x8] sm:$0xff]
    %v63 = vld [vmem:[#allocation7 + $0x10] sm:$0xff]
    %v64 = vld [vmem:[#allocation7 + $0x18] sm:$0xff]
    %vm65 = vcmask 261120
    %v67 = vsel %vm65, %v59, 0
    %v70 = vsel %vm65, %v60, 0
    %72 = vmatprep.subr.mxu0 0.0
    %73 = vmatpush1.msra.mxu0 %v61
    %74 = vmatprep.subr.mxu0 0.0
    %75 = vmatpush1.msra.mxu0 %v62
    %76 = vmatprep.subr.mxu0 0.0
    %77 = vmatpush1.msra.mxu0 %v63
    %78 = vmatprep.subr.mxu0 0.0
    %79 = vmatpush1.msra.mxu0 %v64
    %80 = vmatprep.subr.mxu0 0.0
    %81 = vmatpush1.msra.mxu0 0.0
    %82 = vmatprep.subr.mxu0 0.0
    %83 = vmatpush1.msra.mxu0 0.0
    %84 = vmatprep.subr.mxu0 0.0
    %85 = vmatpush1.msra.mxu0 0.0
    %86 = vmatprep.subr.mxu0 0.0
    %87 = vmatpush1.msra.mxu0 0.0
    %88 = vmatprep.subr.mxu0 0.0
    %89 = vmatpush1.msra.mxu0 0.0
    %90 = vmatprep.subr.mxu0 0.0
    %91 = vmatpush1.msra.mxu0 0.0
    %92 = vmatprep.subr.mxu0 0.0
    %93 = vmatpush1.msra.mxu0 0.0
    %94 = vmatprep.subr.mxu0 0.0
    %95 = vmatpush1.msra.mxu0 0.0
    %96 = vmatprep.subr.mxu0 0.0
    %97 = vmatpush1.msra.mxu0 0.0
    %98 = vmatprep.subr.mxu0 0.0
    %99 = vmatpush1.msra.mxu0 0.0
    %100 = vmatprep.subr.mxu0 0.0
    %101 = vmatpush1.msra.mxu0 0.0
    %102 = vmatprep.subr.mxu0 0.0
    %103 = vmatpush1.msra.mxu0 0.0
    %104 = vmatprep.subr.mxu0 0.0
    %105 = vmatpush1.msra.mxu0 0.0
    %106 = vmatprep.subr.mxu0 0.0
    %107 = vmatpush1.msra.mxu0 0.0
    %108 = vmatprep.subr.mxu0 0.0
    %109 = vmatpush1.msra.mxu0 0.0
    %110 = vmatprep.subr.mxu0 0.0
    %111 = vmatpush1.msra.mxu0 0.0
    %112 = vmatprep.subr.mxu0 0.0
    %113 = vmatpush1.msra.mxu0 0.0
    %114 = vmatprep.subr.mxu0 0.0
    %115 = vmatpush1.msra.mxu0 0.0
    %116 = vmatprep.subr.mxu0 0.0
    %117 = vmatpush1.msra.mxu0 0.0
    %118 = vmatprep.subr.mxu0 0.0
    %119 = vmatpush1.msra.mxu0 0.0
    %120 = vmatprep.subr.mxu0 0.0
    %121 = vmatpush1.msra.mxu0 0.0
    %122 = vmatprep.subr.mxu0 0.0
    %123 = vmatpush1.msra.mxu0 0.0
    %124 = vmatprep.subr.mxu0 0.0
    %125 = vmatpush1.msra.mxu0 0.0
    %126 = vmatprep.subr.mxu0 0.0
    %127 = vmatpush1.msra.mxu0 0.0
    %128 = vmatprep.subr.mxu0 0.0
    %129 = vmatpush1.msra.mxu0 0.0
    %130 = vmatprep.subr.mxu0 0.0
    %131 = vmatpush1.msra.mxu0 0.0
    %132 = vmatprep.subr.mxu0 0.0
    %133 = vmatpush1.msra.mxu0 0.0
    %134 = vmatprep.subr.mxu0 0.0
    %135 = vmatpush1.msra.mxu0 0.0
    %136 = vmatprep.mubr.f32.mxu0 0.0
    %137 = vmatmul.mubr.f32.gmra.mrb[0].mxu0 %v67
    %v138 = vpop.f32.mrb[0].mxu0
    %v139 = vadd.f32 0.0, %v138
    %v140 = vpop.f32.mrb[0].mxu0
    %141 = vmatprep.mubr.f32.mxu0 0.0
    %142 = vmatmul.mubr.f32.gmra.mrb[0].mxu0 %v70
    %v143 = vpop.f32.mrb[0].mxu0
    %v144 = vadd.f32 0.0, %v143
    %v145 = vpop.f32.mrb[0].mxu0
    %146 = vdwg.mxu0
    %v147 = vld [vmem:[#allocation2] sm:$0xff]
    %v148 = vld [vmem:[#allocation2 + $0x8] sm:$0xff]
    %v149 = vld [vmem:[%s3] sm:$0x1]
    %v151 = vlaneseq
    %v152 = vshrl.u32 %v151, 7
    %v153 = vsub.s32 0, %v152
    %v154 = vrot.slane %v149, %v153
    %vm156 = vcmask 64512
    %v158 = vsel %vm156, %v147, 0
    %160 = vmatprep.subr.mxu0 0.0
    %161 = vmatpush1.msra.mxu0 %v139
    %162 = vmatprep.subr.mxu0 0.0
    %163 = vmatpush1.msra.mxu0 0.0
    %164 = vmatprep.subr.mxu0 0.0
    %165 = vmatpush1.msra.mxu0 0.0
    %166 = vmatprep.subr.mxu0 0.0
    %167 = vmatpush1.msra.mxu0 0.0
    %168 = vmatprep.subr.mxu0 0.0
    %169 = vmatpush1.msra.mxu0 0.0
    %170 = vmatprep.subr.mxu0 0.0
    %171 = vmatpush1.msra.mxu0 0.0
    %172 = vmatprep.subr.mxu0 0.0
    %173 = vmatpush1.msra.mxu0 0.0
    %174 = vmatprep.subr.mxu0 0.0
    %175 = vmatpush1.msra.mxu0 0.0
    %176 = vmatprep.subr.mxu0 0.0
    %177 = vmatpush1.msra.mxu0 0.0
    %178 = vmatprep.subr.mxu0 0.0
    %179 = vmatpush1.msra.mxu0 0.0
    %180 = vmatprep.subr.mxu0 0.0
    %181 = vmatpush1.msra.mxu0 0.0
    %182 = vmatprep.subr.mxu0 0.0
    %183 = vmatpush1.msra.mxu0 0.0
    %184 = vmatprep.subr.mxu0 0.0
    %185 = vmatpush1.msra.mxu0 0.0
    %186 = vmatprep.subr.mxu0 0.0
    %187 = vmatpush1.msra.mxu0 0.0
    %188 = vmatprep.subr.mxu0 0.0
    %189 = vmatpush1.msra.mxu0 0.0
    %190 = vmatprep.subr.mxu0 0.0
    %191 = vmatpush1.msra.mxu0 0.0
    %192 = vmatprep.subr.mxu0 0.0
    %193 = vmatpush1.msra.mxu0 0.0
    %194 = vmatprep.subr.mxu0 0.0
    %195 = vmatpush1.msra.mxu0 0.0
    %196 = vmatprep.subr.mxu0 0.0
    %197 = vmatpush1.msra.mxu0 0.0
    %198 = vmatprep.subr.mxu0 0.0
    %199 = vmatpush1.msra.mxu0 0.0
    %200 = vmatprep.subr.mxu0 0.0
    %201 = vmatpush1.msra.mxu0 0.0
    %202 = vmatprep.subr.mxu0 0.0
    %203 = vmatpush1.msra.mxu0 0.0
    %204 = vmatprep.subr.mxu0 0.0
    %205 = vmatpush1.msra.mxu0 0.0
    %206 = vmatprep.subr.mxu0 0.0
    %207 = vmatpush1.msra.mxu0 0.0
    %208 = vmatprep.subr.mxu0 0.0
    %209 = vmatpush1.msra.mxu0 0.0
    %210 = vmatprep.subr.mxu0 0.0
    %211 = vmatpush1.msra.mxu0 0.0
    %212 = vmatprep.subr.mxu0 0.0
    %213 = vmatpush1.msra.mxu0 0.0
    %214 = vmatprep.subr.mxu0 0.0
    %215 = vmatpush1.msra.mxu0 0.0
    %216 = vmatprep.subr.mxu0 0.0
    %217 = vmatpush1.msra.mxu0 0.0
    %218 = vmatprep.subr.mxu0 0.0
    %219 = vmatpush1.msra.mxu0 0.0
    %220 = vmatprep.subr.mxu0 0.0
    %221 = vmatpush1.msra.mxu0 0.0
    %222 = vmatprep.subr.mxu0 0.0
    %223 = vmatpush1.msra.mxu0 0.0
    %224 = vmatprep.mubr.f32.mxu0 0.0
    %225 = vmatmul.mubr.f32.gmra.mrb[0].mxu0 %v158
    %v226 = vpop.f32.mrb[0].mxu0
    %v227 = vadd.f32 %v154, %v226
    %v228 = vpop.f32.mrb[0].mxu0
    %229 = vdwg.mxu0
    %v231 = vsel %vm156, %v148, 0
    %233 = vmatprep.subr.mxu0 0.0
    %234 = vmatpush1.msra.mxu0 %v144
    %235 = vmatprep.subr.mxu0 0.0
    %236 = vmatpush1.msra.mxu0 0.0
    %237 = vmatprep.subr.mxu0 0.0
    %238 = vmatpush1.msra.mxu0 0.0
    %239 = vmatprep.subr.mxu0 0.0
    %240 = vmatpush1.msra.mxu0 0.0
    %241 = vmatprep.subr.mxu0 0.0
    %242 = vmatpush1.msra.mxu0 0.0
    %243 = vmatprep.subr.mxu0 0.0
    %244 = vmatpush1.msra.mxu0 0.0
    %245 = vmatprep.subr.mxu0 0.0
    %246 = vmatpush1.msra.mxu0 0.0
    %247 = vmatprep.subr.mxu0 0.0
    %248 = vmatpush1.msra.mxu0 0.0
    %249 = vmatprep.subr.mxu0 0.0
    %250 = vmatpush1.msra.mxu0 0.0
    %251 = vmatprep.subr.mxu0 0.0
    %252 = vmatpush1.msra.mxu0 0.0
    %253 = vmatprep.subr.mxu0 0.0
    %254 = vmatpush1.msra.mxu0 0.0
    %255 = vmatprep.subr.mxu0 0.0
    %256 = vmatpush1.msra.mxu0 0.0
    %257 = vmatprep.subr.mxu0 0.0
    %258 = vmatpush1.msra.mxu0 0.0
    %259 = vmatprep.subr.mxu0 0.0
    %260 = vmatpush1.msra.mxu0 0.0
    %261 = vmatprep.subr.mxu0 0.0
    %262 = vmatpush1.msra.mxu0 0.0
    %263 = vmatprep.subr.mxu0 0.0
    %264 = vmatpush1.msra.mxu0 0.0
    %265 = vmatprep.subr.mxu0 0.0
    %266 = vmatpush1.msra.mxu0 0.0
    %267 = vmatprep.subr.mxu0 0.0
    %268 = vmatpush1.msra.mxu0 0.0
    %269 = vmatprep.subr.mxu0 0.0
    %270 = vmatpush1.msra.mxu0 0.0
    %271 = vmatprep.subr.mxu0 0.0
    %272 = vmatpush1.msra.mxu0 0.0
    %273 = vmatprep.subr.mxu0 0.0
    %274 = vmatpush1.msra.mxu0 0.0
    %275 = vmatprep.subr.mxu0 0.0
    %276 = vmatpush1.msra.mxu0 0.0
    %277 = vmatprep.subr.mxu0 0.0
    %278 = vmatpush1.msra.mxu0 0.0
    %279 = vmatprep.subr.mxu0 0.0
    %280 = vmatpush1.msra.mxu0 0.0
    %281 = vmatprep.subr.mxu0 0.0
    %282 = vmatpush1.msra.mxu0 0.0
    %283 = vmatprep.subr.mxu0 0.0
    %284 = vmatpush1.msra.mxu0 0.0
    %285 = vmatprep.subr.mxu0 0.0
    %286 = vmatpush1.msra.mxu0 0.0
    %287 = vmatprep.subr.mxu0 0.0
    %288 = vmatpush1.msra.mxu0 0.0
    %289 = vmatprep.subr.mxu0 0.0
    %290 = vmatpush1.msra.mxu0 0.0
    %291 = vmatprep.subr.mxu0 0.0
    %292 = vmatpush1.msra.mxu0 0.0
    %293 = vmatprep.subr.mxu0 0.0
    %294 = vmatpush1.msra.mxu0 0.0
    %295 = vmatprep.subr.mxu0 0.0
    %296 = vmatpush1.msra.mxu0 0.0
    %297 = vmatprep.mubr.f32.mxu0 0.0
    %298 = vmatmul.mubr.f32.gmra.mrb[0].mxu0 %v231
    %v299 = vpop.f32.mrb[0].mxu0
    %v300 = vadd.f32 %v154, %v299
    %v301 = vpop.f32.mrb[0].mxu0
    %302 = vdwg.mxu0
    %v303 = vtanh.pop %v227
    %v304 = vtanh.pop %v300
    %305 = vst.msk [vmem:[#allocation8] sm:$0xff] %vm65, %v303
    %306 = vst.msk [vmem:[#allocation8 + $0x8] sm:$0xff] %vm65, %v304
    // Predicated region
    $region30: #{coupled_ode_rhs.1} parent=1 // pred_check
      _
    $region31: #{coupled_ode_rhs.1} parent=1 // pred_check_branch
      %308 = sbr.rel (0) target = $region33
    $region32: #{coupled_ode_rhs.1} parent=1 // pred_region
      %s310 = ssub.s32 256, 256
      %311 = vsyncadd [#allocation4], %s310
      %s312 = sshll.u32 [#allocation8], 4
      %s313 = int_to_ptr.vmem [resolvable:$true] %s312
      %318 = dma.vmem_to_hbm [thread:$0]  %s313, 256, %s4, [#allocation4], 128, 128, 8
    $region33: #{coupled_ode_rhs.1} parent=1 // pred_fallthru
      _
    // Predicated region
    $region34: #{coupled_ode_rhs.1} parent=1 // pred_check
      _
    $region35: #{coupled_ode_rhs.1} parent=1 // pred_check_branch
      %320 = sbr.rel (0) target = $region37
    $region36: #{coupled_ode_rhs.1} parent=1 // pred_region
      %321 = dma.done [#allocation4], 256
    $region37: #{coupled_ode_rhs.1} parent=1 // pred_fallthru
      _
    %322 = vsyncpa [#allocation3], 1
    %323 = vsyncpa [#allocation6], 1
    %324 = vsyncpa [#allocation4], 1

</llo_original>
